<compile_context>
chip_gen: v5e
topology: v5e:2x2
jax: 0.10.0
libtpu: 0.0.40
codegen_flags: <defaults>
</compile_context>

<pallas_src>
import jax
import jax.numpy as jnp
from jax import lax
from jax.experimental import pallas as pl
from jax.experimental.pallas import tpu as pltpu


def _mlp_probe_kernel(x_ref, w1_ref, b1_ref, w2_ref, b2_ref, w3r_ref, b3_ref,
                      o_ref):
    # One batch tile per grid step; all intermediates stay in VMEM/vregs.
    x = x_ref[...]                                              # (tile_b, in)

    h1 = jnp.dot(x, w1_ref[...], preferred_element_type=jnp.float32)
    h1 = jnp.maximum(h1 + b1_ref[...], 0.0)                     # (tile_b, hid)

    h2 = jnp.dot(h1, w2_ref[...], preferred_element_type=jnp.float32)
    h2 = jnp.maximum(h2 + b2_ref[...], 0.0)                     # (tile_b, out)

    # Final projection: (1, out) contracted against h2's feature axis
    # (transposed-RHS matmul form) -> batch lands on the lane axis: (1, tile_b).
    # No explicit transpose/relayout of h2 and no N=1 systolic pass.
    logit = lax.dot_general(w3r_ref[...], h2,
                            dimension_numbers=(((1,), (1,)), ((), ())),
                            preferred_element_type=jnp.float32)  # (1, tile_b)
    logit = logit + b3_ref[...]                                  # b3 is (1, 1)

    # Lane-dense (unmasked) store: output block is (1, 1, tile_b).
    o_ref[...] = jax.nn.sigmoid(logit).astype(o_ref.dtype)[None]


def _round_up(v, m):
    return (v + m - 1) // m * m


def mlp_probe_forward(x, params, *, tile_b=1024):
    """Runs SimpleMLPProbe.forward(x) via a single fused Pallas kernel.

    x:      (B, input_dim) float32
    params: dict with w1 (in,hid), b1 (1,hid), w2 (hid,out), b2 (1,out),
            w3 (out,1), b3 (1,1)
    returns (B, 1) float32
    """
    w1, b1 = params["w1"], params["b1"]
    w2, b2 = params["w2"], params["b2"]
    w3, b3 = params["w3"], params["b3"]

    B, input_dim = x.shape
    hidden_dim = w1.shape[1]
    output_dim = w2.shape[1]

    # Batch tile: multiple of 128 (lane-dense output row, sublane-aligned x
    # tile), clamped so tiny batches don't over-pad and so the double-buffered
    # x tile stays within a ~8 MiB VMEM budget even for wide input_dim.
    vmem_budget_for_x = 8 * 1024 * 1024                       # per buffer pair
    max_tile_by_vmem = max(128,
                           (vmem_budget_for_x // (2 * 4 * max(input_dim, 1)))
                           // 128 * 128)
    tile_b = max(128, min(_round_up(int(tile_b), 128),
                          _round_up(B, 128),
                          max_tile_by_vmem))
    num_tiles = pl.cdiv(B, tile_b)
    b_pad = num_tiles * tile_b
    if b_pad != B:
        x = jnp.pad(x, ((0, b_pad - B), (0, 0)))

    # w3 as a (1, output_dim) row so the kernel can contract it against h2's
    # feature (lane) axis directly.
    w3_row = w3.reshape(1, output_dim)

    flops = 2 * b_pad * (input_dim * hidden_dim
                         + hidden_dim * output_dim
                         + output_dim)
    bytes_accessed = 4 * (b_pad * input_dim + b_pad
                          + input_dim * hidden_dim + hidden_dim
                          + hidden_dim * output_dim + output_dim
                          + output_dim + 1)

    # Weights/biases broadcast to every batch tile (block index 0 always);
    # Pallas keeps the same block resident across grid steps.
    wspec = lambda shape: pl.BlockSpec(shape, lambda i: (0, 0))

    out = pl.pallas_call(
        _mlp_probe_kernel,
        out_shape=jax.ShapeDtypeStruct((num_tiles, 1, tile_b), jnp.float32),
        grid_spec=pltpu.PrefetchScalarGridSpec(
            num_scalar_prefetch=0,
            grid=(num_tiles,),
            in_specs=[
                pl.BlockSpec((tile_b, input_dim), lambda i: (i, 0)),   # x tile
                wspec((input_dim, hidden_dim)),                        # w1
                wspec((1, hidden_dim)),                                # b1
                wspec((hidden_dim, output_dim)),                       # w2
                wspec((1, output_dim)),                                # b2
                wspec((1, output_dim)),                                # w3 row
                wspec((1, 1)),                                         # b3
            ],
            out_specs=pl.BlockSpec((1, 1, tile_b), lambda i: (i, 0, 0)),
        ),
        compiler_params=pltpu.CompilerParams(
            dimension_semantics=("parallel",),
            vmem_limit_bytes=32 * 1024 * 1024),
        cost_estimate=pl.CostEstimate(
            flops=int(flops),
            transcendentals=int(b_pad),          # one sigmoid per row
            bytes_accessed=int(bytes_accessed)),
    )(x, w1, b1, w2, b2, w3_row, b3)

    # (num_tiles, 1, tile_b) -> (B, 1); row t*tile_b + j lives at out[t, 0, j].
    return out.reshape(b_pad, 1)[:B]


def init_params(key, input_dim, hidden_dim, output_dim):
    """Deterministic synthetic parameters (Kaiming-ish uniform like torch)."""
    ks = jax.random.split(key, 6)

    def lin(kw, kb, fan_in, fan_out):
        bound = 1.0 / jnp.sqrt(jnp.float32(fan_in))
        w = jax.random.uniform(kw, (fan_in, fan_out), jnp.float32,
                               -bound, bound)
        b = jax.random.uniform(kb, (1, fan_out), jnp.float32, -bound, bound)
        return w, b

    w1, b1 = lin(ks[0], ks[1], input_dim, hidden_dim)
    w2, b2 = lin(ks[2], ks[3], hidden_dim, output_dim)
    w3, b3 = lin(ks[4], ks[5], output_dim, 1)
    return dict(w1=w1, b1=b1, w2=w2, b2=b2, w3=w3, b3=b3)


def reference_forward(x, p):
    h1 = jnp.maximum(x @ p["w1"] + p["b1"], 0.0)
    h2 = jnp.maximum(h1 @ p["w2"] + p["b2"], 0.0)
    return jax.nn.sigmoid(h2 @ p["w3"] + p["b3"])


if __name__ == "__main__":
    batch, input_dim, hidden_dim, output_dim = 8, 32, 64, 16

    key = jax.random.PRNGKey(0)
    kx, kp = jax.random.split(key)
    x = jax.random.normal(kx, (batch, input_dim), jnp.float32)
    params = init_params(kp, input_dim, hidden_dim, output_dim)

    # Small batch (pads up to one 128-row tile).
    out = jax.block_until_ready(mlp_probe_forward(x, params))
    ref = reference_forward(x, params)
    assert out.shape == (batch, 1)
    assert jnp.allclose(out, ref, atol=1e-5, rtol=1e-5), "mismatch vs ref"

    # Larger, non-tile-divisible batch exercises the multi-step grid + padding.
    xb = jax.random.normal(kx, (1000, input_dim), jnp.float32)
    outb = jax.block_until_ready(mlp_probe_forward(xb, params, tile_b=256))
    refb = reference_forward(xb, params)
    assert outb.shape == (1000, 1)
    assert jnp.allclose(outb, refb, atol=1e-5, rtol=1e-5), "mismatch vs ref (big)"

    print("KERNEL_OK")
</pallas_src>

<mosaic_0001>
module attributes {stable_mosaic.version = 11 : i64} {
  func.func @_mlp_probe_kernel(%arg0: i32, %arg1: memref<128x32xf32, #tpu.memory_space<vmem>>, %arg2: memref<32x64xf32, #tpu.memory_space<vmem>>, %arg3: memref<1x64xf32, #tpu.memory_space<vmem>>, %arg4: memref<64x16xf32, #tpu.memory_space<vmem>>, %arg5: memref<1x16xf32, #tpu.memory_space<vmem>>, %arg6: memref<1x16xf32, #tpu.memory_space<vmem>>, %arg7: memref<1x1xf32, #tpu.memory_space<vmem>>, %arg8: memref<1x1x128xf32, #tpu.memory_space<vmem>>) attributes {dimension_semantics = [#tpu.dimension_semantics<parallel>], iteration_bounds = array<i64: 1>, scalar_prefetch = 0 : i64, scratch_operands = 0 : i64, tpu.core_type = #tpu.core_type<tc>, window_params = [{transform_indices = @transform_0, window_bounds = array<i64: 128, 32>}, {pipeline_mode = #tpu.pipeline_mode<synchronous>, transform_indices = @transform_1, window_bounds = array<i64: 32, 64>}, {pipeline_mode = #tpu.pipeline_mode<synchronous>, transform_indices = @transform_2, window_bounds = array<i64: 1, 64>}, {pipeline_mode = #tpu.pipeline_mode<synchronous>, transform_indices = @transform_3, window_bounds = array<i64: 64, 16>}, {pipeline_mode = #tpu.pipeline_mode<synchronous>, transform_indices = @transform_4, window_bounds = array<i64: 1, 16>}, {pipeline_mode = #tpu.pipeline_mode<synchronous>, transform_indices = @transform_5, window_bounds = array<i64: 1, 16>}, {pipeline_mode = #tpu.pipeline_mode<synchronous>, transform_indices = @transform_6, window_bounds = array<i64: 1, 1>}, {transform_indices = @transform_7, window_bounds = array<i64: 1, 1, 128>}]} {
    %c0 = arith.constant 0 : index
    %c0_0 = arith.constant 0 : index
    %0 = vector.load %arg1[%c0, %c0_0] : memref<128x32xf32, #tpu.memory_space<vmem>>, vector<128x32xf32>
    %c0_1 = arith.constant 0 : index
    %c0_2 = arith.constant 0 : index
    %1 = vector.load %arg2[%c0_1, %c0_2] : memref<32x64xf32, #tpu.memory_space<vmem>>, vector<32x64xf32>
    %cst = arith.constant dense<0.000000e+00> : vector<128x64xf32>
    %2 = tpu.matmul %0, %1, %cst {dimension_numbers = #tpu.dot_dimension_numbers<[1], [0], [0], [1], [0, 0, 1, 1], [], []>} : vector<128x32xf32>, vector<32x64xf32>, vector<128x64xf32> -> vector<128x64xf32>
    %c0_3 = arith.constant 0 : index
    %c0_4 = arith.constant 0 : index
    %3 = vector.load %arg3[%c0_3, %c0_4] : memref<1x64xf32, #tpu.memory_space<vmem>>, vector<1x64xf32>
    %4 = vector.broadcast %3 : vector<1x64xf32> to vector<128x64xf32>
    %5 = arith.addf %2, %4 : vector<128x64xf32>
    %cst_5 = arith.constant 0.000000e+00 : f32
    %6 = vector.broadcast %cst_5 : f32 to vector<128x64xf32>
    %7 = arith.maximumf %5, %6 : vector<128x64xf32>
    %c0_6 = arith.constant 0 : index
    %c0_7 = arith.constant 0 : index
    %8 = vector.load %arg4[%c0_6, %c0_7] : memref<64x16xf32, #tpu.memory_space<vmem>>, vector<64x16xf32>
    %cst_8 = arith.constant dense<0.000000e+00> : vector<128x16xf32>
    %9 = tpu.matmul %7, %8, %cst_8 {dimension_numbers = #tpu.dot_dimension_numbers<[1], [0], [0], [1], [0, 0, 1, 1], [], []>} : vector<128x64xf32>, vector<64x16xf32>, vector<128x16xf32> -> vector<128x16xf32>
    %c0_9 = arith.constant 0 : index
    %c0_10 = arith.constant 0 : index
    %10 = vector.load %arg5[%c0_9, %c0_10] : memref<1x16xf32, #tpu.memory_space<vmem>>, vector<1x16xf32>
    %11 = vector.broadcast %10 : vector<1x16xf32> to vector<128x16xf32>
    %12 = arith.addf %9, %11 : vector<128x16xf32>
    %cst_11 = arith.constant 0.000000e+00 : f32
    %13 = vector.broadcast %cst_11 : f32 to vector<128x16xf32>
    %14 = arith.maximumf %12, %13 : vector<128x16xf32>
    %c0_12 = arith.constant 0 : index
    %c0_13 = arith.constant 0 : index
    %15 = vector.load %arg6[%c0_12, %c0_13] : memref<1x16xf32, #tpu.memory_space<vmem>>, vector<1x16xf32>
    %cst_14 = arith.constant dense<0.000000e+00> : vector<1x128xf32>
    %16 = tpu.matmul %15, %14, %cst_14 {dimension_numbers = #tpu.dot_dimension_numbers<[1], [1], [0], [0], [0, 0, 1, 0], [], []>} : vector<1x16xf32>, vector<128x16xf32>, vector<1x128xf32> -> vector<1x128xf32>
    %c0_15 = arith.constant 0 : index
    %c0_16 = arith.constant 0 : index
    %17 = vector.load %arg7[%c0_15, %c0_16] : memref<1x1xf32, #tpu.memory_space<vmem>>, vector<1x1xf32>
    %18 = vector.broadcast %17 : vector<1x1xf32> to vector<1x128xf32>
    %19 = arith.addf %16, %18 : vector<1x128xf32>
    %20 = arith.negf %19 : vector<1x128xf32>
    %21 = math.exp %20 : vector<1x128xf32>
    %cst_17 = arith.constant 1.000000e+00 : f32
    %22 = vector.broadcast %cst_17 : f32 to vector<1x128xf32>
    %23 = arith.addf %22, %21 : vector<1x128xf32>
    %24 = arith.divf %22, %23 : vector<1x128xf32>
    %25 = vector.shape_cast %24 : vector<1x128xf32> to vector<1x1x128xf32>
    %c0_18 = arith.constant 0 : index
    %c0_19 = arith.constant 0 : index
    %c0_20 = arith.constant 0 : index
    %26 = vector.load %arg8[%c0_18, %c0_19, %c0_20] : memref<1x1x128xf32, #tpu.memory_space<vmem>>, vector<1x1x128xf32>
    tpu.vector_store %arg8[%c0_18, %c0_19, %c0_20], %25 {strides = array<i32>} : memref<1x1x128xf32, #tpu.memory_space<vmem>>, vector<1x1x128xf32>,
    return
  }
  func.func @transform_0(%arg0: i32) -> (i32, i32) {
    %c0_i32 = arith.constant 0 : i32
    %c0_i32_0 = arith.constant 0 : i32
    return %arg0, %c0_i32 : i32, i32
  }
  func.func @transform_1(%arg0: i32) -> (i32, i32) {
    %c0_i32 = arith.constant 0 : i32
    %c0_i32_0 = arith.constant 0 : i32
    %c0_i32_1 = arith.constant 0 : i32
    return %c0_i32, %c0_i32_0 : i32, i32
  }
  func.func @transform_2(%arg0: i32) -> (i32, i32) {
    %c0_i32 = arith.constant 0 : i32
    %c0_i32_0 = arith.constant 0 : i32
    %c0_i32_1 = arith.constant 0 : i32
    return %c0_i32, %c0_i32_0 : i32, i32
  }
  func.func @transform_3(%arg0: i32) -> (i32, i32) {
    %c0_i32 = arith.constant 0 : i32
    %c0_i32_0 = arith.constant 0 : i32
    %c0_i32_1 = arith.constant 0 : i32
    return %c0_i32, %c0_i32_0 : i32, i32
  }
  func.func @transform_4(%arg0: i32) -> (i32, i32) {
    %c0_i32 = arith.constant 0 : i32
    %c0_i32_0 = arith.constant 0 : i32
    %c0_i32_1 = arith.constant 0 : i32
    return %c0_i32, %c0_i32_0 : i32, i32
  }
  func.func @transform_5(%arg0: i32) -> (i32, i32) {
    %c0_i32 = arith.constant 0 : i32
    %c0_i32_0 = arith.constant 0 : i32
    %c0_i32_1 = arith.constant 0 : i32
    return %c0_i32, %c0_i32_0 : i32, i32
  }
  func.func @transform_6(%arg0: i32) -> (i32, i32) {
    %c0_i32 = arith.constant 0 : i32
    %c0_i32_0 = arith.constant 0 : i32
    %c0_i32_1 = arith.constant 0 : i32
    return %c0_i32, %c0_i32_0 : i32, i32
  }
  func.func @transform_7(%arg0: i32) -> (i32, i32, i32) {
    %c0_i32 = arith.constant 0 : i32
    %c0_i32_0 = arith.constant 0 : i32
    %c0_i32_1 = arith.constant 0 : i32
    return %arg0, %c0_i32, %c0_i32_0 : i32, i32, i32
  }
}

</mosaic_0001>

<llo_original>
// kernel: tpu_custom_call.1
$region0: #{tpu_custom_call.1}
  #allocation0 [shape = 'u32[]', space=smem, size = 0x4, offset = 0x4, fixed_abs, tag = 'smem constant byte address 0x4 - core index']
  #allocation1 [shape = 'u32[72,128]{1,0:T(1,128)}', space=vmem, size = 0x9000, scoped, tag = 'internal scratch']
  #allocation2 [shape = 'f32[1,1]{1,0:T(1,128)S(1)}', space=vmem, size = 0x200, scoped, tag = 'scoped memory for tpu_custom_call.1']
  %s0 = inlined_call_operand.vmem [shape: f32[128,32], index: 0, kind: input, shape index: {}]
  %s1 = inlined_call_operand.vmem [shape: f32[32,64], index: 1, kind: input, shape index: {}]
  %s2 = inlined_call_operand.vmem [shape: f32[1,64], index: 2, kind: input, shape index: {}]
  %s3 = inlined_call_operand.vmem [shape: f32[64,16], index: 3, kind: input, shape index: {}]
  %s4 = inlined_call_operand.vmem [shape: f32[1,16], index: 4, kind: input, shape index: {}]
  %s5 = inlined_call_operand.vmem [shape: f32[1,16], index: 5, kind: input, shape index: {}]
  %s6 = inlined_call_operand.<no memory space> [shape: f32[1,1], index: 6, kind: input, shape index: {}]
  %s7 = inlined_call_operand.hbm [shape: f32[1,1,128], index: 7, kind: output, shape index: {}]
  %s8 = sld [smem:[#allocation0]]
  $region38: #{tpu_custom_call.1} parent=0
    _
  %s10 = ssub.s32 1, %s8
  %s11 = scalar_select 0, %s10, %s8
  %v12 = vstv %s6
  %13 = vst [vmem:[#allocation2] sm:$0x1] %v12
  $region1: #{tpu_custom_call.1} parent=0
    #allocation3 [shape = 'u8[512]{0}', space=vmem, size = 0x400, scoped, tag = 'output window, operand 0, single buffered']
    #allocation4 [shape = 's32[1]{0}', space=sflag, size = 0x4, scoped, tag = 'scoped memory for tpu_custom_call.1']
    %14 = vsyncpa [#allocation4], 0
    // Predicated region
    $region2: #{tpu_custom_call.1} parent=1 // pred_check
      _
    $region3: #{tpu_custom_call.1} parent=1 // pred_check_branch
      %16 = sbr.rel (0) target = $region5
    $region4: #{tpu_custom_call.1} parent=1 // pred_region
      _
    $region5: #{tpu_custom_call.1} parent=1 // pred_fallthru
      _
    // Predicated region
    $region6: #{tpu_custom_call.1} parent=1 // pred_check
      _
    $region7: #{tpu_custom_call.1} parent=1 // pred_check_branch
      %18 = sbr.rel (0) target = $region9
    $region8: #{tpu_custom_call.1} parent=1 // pred_region
      _
    $region9: #{tpu_custom_call.1} parent=1 // pred_fallthru
      _
    // Predicated region
    $region10: #{tpu_custom_call.1} parent=1 // pred_check
      _
    $region11: #{tpu_custom_call.1} parent=1 // pred_check_branch
      %20 = sbr.rel (0) target = $region13
    $region12: #{tpu_custom_call.1} parent=1 // pred_region
      _
    $region13: #{tpu_custom_call.1} parent=1 // pred_fallthru
      _
    // Predicated region
    $region14: #{tpu_custom_call.1} parent=1 // pred_check
      _
    $region15: #{tpu_custom_call.1} parent=1 // pred_check_branch
      %22 = sbr.rel (0) target = $region17
    $region16: #{tpu_custom_call.1} parent=1 // pred_region
      _
    $region17: #{tpu_custom_call.1} parent=1 // pred_fallthru
      _
    // Predicated region
    $region18: #{tpu_custom_call.1} parent=1 // pred_check
      _
    $region19: #{tpu_custom_call.1} parent=1 // pred_check_branch
      %24 = sbr.rel (0) target = $region21
    $region20: #{tpu_custom_call.1} parent=1 // pred_region
      _
    $region21: #{tpu_custom_call.1} parent=1 // pred_fallthru
      _
    // Predicated region
    $region22: #{tpu_custom_call.1} parent=1 // pred_check
      _
    $region23: #{tpu_custom_call.1} parent=1 // pred_check_branch
      %26 = sbr.rel (0) target = $region25
    $region24: #{tpu_custom_call.1} parent=1 // pred_region
      _
    $region25: #{tpu_custom_call.1} parent=1 // pred_fallthru
      _
    // Predicated region
    $region26: #{tpu_custom_call.1} parent=1 // pred_check
      _
    $region27: #{tpu_custom_call.1} parent=1 // pred_check_branch
      %28 = sbr.rel (0) target = $region29
    $region28: #{tpu_custom_call.1} parent=1 // pred_region
      _
    $region29: #{tpu_custom_call.1} parent=1 // pred_fallthru
      _
    %v29 = vld [vmem:[%s0] sm:$0xff]
    %v30 = vld [vmem:[%s0 + $0x8] sm:$0xff]
    %v31 = vld [vmem:[%s0 + $0x10] sm:$0xff]
    %v32 = vld [vmem:[%s0 + $0x18] sm:$0xff]
    %v33 = vld [vmem:[%s0 + $0x20] sm:$0xff]
    %v34 = vld [vmem:[%s0 + $0x28] sm:$0xff]
    %v35 = vld [vmem:[%s0 + $0x30] sm:$0xff]
    %v36 = vld [vmem:[%s0 + $0x38] sm:$0xff]
    %v37 = vld [vmem:[%s0 + $0x40] sm:$0xff]
    %v38 = vld [vmem:[%s0 + $0x48] sm:$0xff]
    %v39 = vld [vmem:[%s0 + $0x50] sm:$0xff]
    %v40 = vld [vmem:[%s0 + $0x58] sm:$0xff]
    %v41 = vld [vmem:[%s0 + $0x60] sm:$0xff]
    %v42 = vld [vmem:[%s0 + $0x68] sm:$0xff]
    %v43 = vld [vmem:[%s0 + $0x70] sm:$0xff]
    %v44 = vld [vmem:[%s0 + $0x78] sm:$0xff]
    %v45 = vld [vmem:[%s1] sm:$0xff]
    %v46 = vld [vmem:[%s1 + $0x8] sm:$0xff]
    %v47 = vld [vmem:[%s1 + $0x10] sm:$0xff]
    %v48 = vld [vmem:[%s1 + $0x18] sm:$0xff]
    %v49 = vld [vmem:[%s2] sm:$0x1]
    %v51 = vperm.slane %v49, 0
    %vm53 = vcmask 261120
    %v55 = vsel %vm53, %v29, 0
    %v58 = vsel %vm53, %v30, 0
    %v61 = vsel %vm53, %v31, 0
    %v64 = vsel %vm53, %v32, 0
    %v67 = vsel %vm53, %v33, 0
    %v70 = vsel %vm53, %v34, 0
    %v73 = vsel %vm53, %v35, 0
    %v76 = vsel %vm53, %v36, 0
    %v79 = vsel %vm53, %v37, 0
    %v82 = vsel %vm53, %v38, 0
    %v85 = vsel %vm53, %v39, 0
    %v88 = vsel %vm53, %v40, 0
    %v91 = vsel %vm53, %v41, 0
    %v94 = vsel %vm53, %v42, 0
    %v97 = vsel %vm53, %v43, 0
    %v100 = vsel %vm53, %v44, 0
    %102 = vmatpush.msra.mxu0 0.0
    %103 = vmatpush.msra.mxu0 0.0
    %104 = vmatpush.msra.mxu0 0.0
    %105 = vmatpush.msra.mxu0 0.0
    %106 = vmatpush.msra.mxu0 0.0
    %107 = vmatpush.msra.mxu0 0.0
    %108 = vmatpush.msra.mxu0 0.0
    %109 = vmatpush.msra.mxu0 0.0
    %110 = vmatpush.msra.mxu0 0.0
    %111 = vmatpush.msra.mxu0 0.0
    %112 = vmatpush.msra.mxu0 0.0
    %113 = vmatpush.msra.mxu0 0.0
    %114 = vmatpush.msra.mxu0 %v48
    %115 = vmatpush.msra.mxu0 %v47
    %116 = vmatpush.msra.mxu0 %v46
    %117 = vmatpush.msra.mxu0 %v45
    %118 = vmatmul.f32.gmra.mxu0 %v55
    %v119 = vpop.f32.mrf.mxu0
    %v120 = vadd.f32 %v51, %v119
    %121 = vmatmul.f32.gmra.mxu0 %v58
    %v122 = vpop.f32.mrf.mxu0
    %v123 = vadd.f32 %v51, %v122
    %124 = vmatmul.f32.gmra.mxu0 %v61
    %v125 = vpop.f32.mrf.mxu0
    %v126 = vadd.f32 %v51, %v125
    %127 = vmatmul.f32.gmra.mxu0 %v64
    %v128 = vpop.f32.mrf.mxu0
    %v129 = vadd.f32 %v51, %v128
    %130 = vmatmul.f32.gmra.mxu0 %v67
    %v131 = vpop.f32.mrf.mxu0
    %v132 = vadd.f32 %v51, %v131
    %133 = vmatmul.f32.gmra.mxu0 %v70
    %v134 = vpop.f32.mrf.mxu0
    %v135 = vadd.f32 %v51, %v134
    %136 = vmatmul.f32.gmra.mxu0 %v73
    %v137 = vpop.f32.mrf.mxu0
    %v138 = vadd.f32 %v51, %v137
    %139 = vmatmul.f32.gmra.mxu0 %v76
    %v140 = vpop.f32.mrf.mxu0
    %v141 = vadd.f32 %v51, %v140
    %142 = vmatmul.f32.gmra.mxu0 %v79
    %v143 = vpop.f32.mrf.mxu0
    %v144 = vadd.f32 %v51, %v143
    %145 = vmatmul.f32.gmra.mxu0 %v82
    %v146 = vpop.f32.mrf.mxu0
    %v147 = vadd.f32 %v51, %v146
    %148 = vmatmul.f32.gmra.mxu0 %v85
    %v149 = vpop.f32.mrf.mxu0
    %v150 = vadd.f32 %v51, %v149
    %151 = vmatmul.f32.gmra.mxu0 %v88
    %v152 = vpop.f32.mrf.mxu0
    %v153 = vadd.f32 %v51, %v152
    %154 = vmatmul.f32.gmra.mxu0 %v91
    %v155 = vpop.f32.mrf.mxu0
    %v156 = vadd.f32 %v51, %v155
    %157 = vmatmul.f32.gmra.mxu0 %v94
    %v158 = vpop.f32.mrf.mxu0
    %v159 = vadd.f32 %v51, %v158
    %160 = vmatmul.f32.gmra.mxu0 %v97
    %v161 = vpop.f32.mrf.mxu0
    %v162 = vadd.f32 %v51, %v161
    %163 = vmatmul.f32.gmra.mxu0 %v100
    %v164 = vpop.f32.mrf.mxu0
    %v165 = vadd.f32 %v51, %v164
    %166 = vdwg.mxu0
    %v167 = vmax.f32 %v120, 0.0
    %v168 = vmax.f32 %v123, 0.0
    %v169 = vmax.f32 %v126, 0.0
    %v170 = vmax.f32 %v129, 0.0
    %v171 = vmax.f32 %v132, 0.0
    %v172 = vmax.f32 %v135, 0.0
    %v173 = vmax.f32 %v138, 0.0
    %v174 = vmax.f32 %v141, 0.0
    %v175 = vmax.f32 %v144, 0.0
    %v176 = vmax.f32 %v147, 0.0
    %v177 = vmax.f32 %v150, 0.0
    %v178 = vmax.f32 %v153, 0.0
    %v179 = vmax.f32 %v156, 0.0
    %v180 = vmax.f32 %v159, 0.0
    %v181 = vmax.f32 %v162, 0.0
    %v182 = vmax.f32 %v165, 0.0
    %v183 = vld [vmem:[%s3] sm:$0xff]
    %v184 = vld [vmem:[%s3 + $0x8] sm:$0xff]
    %v185 = vld [vmem:[%s3 + $0x10] sm:$0xff]
    %v186 = vld [vmem:[%s3 + $0x18] sm:$0xff]
    %v187 = vld [vmem:[%s3 + $0x20] sm:$0xff]
    %v188 = vld [vmem:[%s3 + $0x28] sm:$0xff]
    %v189 = vld [vmem:[%s3 + $0x30] sm:$0xff]
    %v190 = vld [vmem:[%s3 + $0x38] sm:$0xff]
    %v191 = vld [vmem:[%s4] sm:$0x1]
    %v193 = vperm.slane %v191, 0
    %vm195 = vcmask 523264
    %v197 = vsel %vm195, %v167, 0
    %v200 = vsel %vm195, %v168, 0
    %v203 = vsel %vm195, %v169, 0
    %v206 = vsel %vm195, %v170, 0
    %v209 = vsel %vm195, %v171, 0
    %v212 = vsel %vm195, %v172, 0
    %v215 = vsel %vm195, %v173, 0
    %v218 = vsel %vm195, %v174, 0
    %v221 = vsel %vm195, %v175, 0
    %v224 = vsel %vm195, %v176, 0
    %v227 = vsel %vm195, %v177, 0
    %v230 = vsel %vm195, %v178, 0
    %v233 = vsel %vm195, %v179, 0
    %v236 = vsel %vm195, %v180, 0
    %v239 = vsel %vm195, %v181, 0
    %v242 = vsel %vm195, %v182, 0
    %244 = vmatpush.msra.mxu0 0.0
    %245 = vmatpush.msra.mxu0 0.0
    %246 = vmatpush.msra.mxu0 0.0
    %247 = vmatpush.msra.mxu0 0.0
    %248 = vmatpush.msra.mxu0 0.0
    %249 = vmatpush.msra.mxu0 0.0
    %250 = vmatpush.msra.mxu0 0.0
    %251 = vmatpush.msra.mxu0 0.0
    %252 = vmatpush.msra.mxu0 %v190
    %253 = vmatpush.msra.mxu0 %v189
    %254 = vmatpush.msra.mxu0 %v188
    %255 = vmatpush.msra.mxu0 %v187
    %256 = vmatpush.msra.mxu0 %v186
    %257 = vmatpush.msra.mxu0 %v185
    %258 = vmatpush.msra.mxu0 %v184
    %259 = vmatpush.msra.mxu0 %v183
    %260 = vmatmul.f32.gmra.mxu0 %v197
    %v261 = vpop.f32.mrf.mxu0
    %v262 = vadd.f32 %v193, %v261
    %263 = vmatmul.f32.gmra.mxu0 %v200
    %v264 = vpop.f32.mrf.mxu0
    %v265 = vadd.f32 %v193, %v264
    %266 = vmatmul.f32.gmra.mxu0 %v203
    %v267 = vpop.f32.mrf.mxu0
    %v268 = vadd.f32 %v193, %v267
    %269 = vmatmul.f32.gmra.mxu0 %v206
    %v270 = vpop.f32.mrf.mxu0
    %v271 = vadd.f32 %v193, %v270
    %272 = vmatmul.f32.gmra.mxu0 %v209
    %v273 = vpop.f32.mrf.mxu0
    %v274 = vadd.f32 %v193, %v273
    %275 = vmatmul.f32.gmra.mxu0 %v212
    %v276 = vpop.f32.mrf.mxu0
    %v277 = vadd.f32 %v193, %v276
    %278 = vmatmul.f32.gmra.mxu0 %v215
    %v279 = vpop.f32.mrf.mxu0
    %v280 = vadd.f32 %v193, %v279
    %281 = vmatmul.f32.gmra.mxu0 %v218
    %v282 = vpop.f32.mrf.mxu0
    %v283 = vadd.f32 %v193, %v282
    %284 = vmatmul.f32.gmra.mxu0 %v221
    %v285 = vpop.f32.mrf.mxu0
    %v286 = vadd.f32 %v193, %v285
    %287 = vmatmul.f32.gmra.mxu0 %v224
    %v288 = vpop.f32.mrf.mxu0
    %v289 = vadd.f32 %v193, %v288
    %290 = vmatmul.f32.gmra.mxu0 %v227
    %v291 = vpop.f32.mrf.mxu0
    %v292 = vadd.f32 %v193, %v291
    %293 = vmatmul.f32.gmra.mxu0 %v230
    %v294 = vpop.f32.mrf.mxu0
    %v295 = vadd.f32 %v193, %v294
    %296 = vmatmul.f32.gmra.mxu0 %v233
    %v297 = vpop.f32.mrf.mxu0
    %v298 = vadd.f32 %v193, %v297
    %299 = vmatmul.f32.gmra.mxu0 %v236
    %v300 = vpop.f32.mrf.mxu0
    %v301 = vadd.f32 %v193, %v300
    %302 = vmatmul.f32.gmra.mxu0 %v239
    %v303 = vpop.f32.mrf.mxu0
    %v304 = vadd.f32 %v193, %v303
    %305 = vmatmul.f32.gmra.mxu0 %v242
    %v306 = vpop.f32.mrf.mxu0
    %v307 = vadd.f32 %v193, %v306
    %308 = vdwg.mxu0
    %v309 = vmax.f32 %v262, 0.0
    %v310 = vmax.f32 %v265, 0.0
    %v311 = vmax.f32 %v268, 0.0
    %v312 = vmax.f32 %v271, 0.0
    %v313 = vmax.f32 %v274, 0.0
    %v314 = vmax.f32 %v277, 0.0
    %v315 = vmax.f32 %v280, 0.0
    %v316 = vmax.f32 %v283, 0.0
    %v317 = vmax.f32 %v286, 0.0
    %v318 = vmax.f32 %v289, 0.0
    %v319 = vmax.f32 %v292, 0.0
    %v320 = vmax.f32 %v295, 0.0
    %v321 = vmax.f32 %v298, 0.0
    %v322 = vmax.f32 %v301, 0.0
    %v323 = vmax.f32 %v304, 0.0
    %v324 = vmax.f32 %v307, 0.0
    %v325 = vld [vmem:[%s5] sm:$0x1]
    %v326 = vld [vmem:[#allocation2] sm:$0x1]
    %328 = vset.pattern.permute.xlu0 0
    %329 = vperm.xlu0 %328, %v326
    %v330 = vpop.permute.xlu0 %329
    %v332 = vperm.slane %v330, 0
    %vm333 = vcmask 130048
    %v335 = vsel %vm333, %v325, 0
    %v338 = vsel %vm333, %v309, 0
    %v341 = vsel %vm333, %v310, 0
    %v344 = vsel %vm333, %v311, 0
    %v347 = vsel %vm333, %v312, 0
    %v350 = vsel %vm333, %v313, 0
    %v353 = vsel %vm333, %v314, 0
    %v356 = vsel %vm333, %v315, 0
    %v359 = vsel %vm333, %v316, 0
    %v362 = vsel %vm333, %v317, 0
    %v365 = vsel %vm333, %v318, 0
    %v368 = vsel %vm333, %v319, 0
    %v371 = vsel %vm333, %v320, 0
    %v374 = vsel %vm333, %v321, 0
    %v377 = vsel %vm333, %v322, 0
    %v380 = vsel %vm333, %v323, 0
    %v383 = vsel %vm333, %v324, 0
    %385 = vmatpush.xpose.msra.mxu0 %v383
    %386 = vmatpush.xpose.msra.mxu0 %v380
    %387 = vmatpush.xpose.msra.mxu0 %v377
    %388 = vmatpush.xpose.msra.mxu0 %v374
    %389 = vmatpush.xpose.msra.mxu0 %v371
    %390 = vmatpush.xpose.msra.mxu0 %v368
    %391 = vmatpush.xpose.msra.mxu0 %v365
    %392 = vmatpush.xpose.msra.mxu0 %v362
    %393 = vmatpush.xpose.msra.mxu0 %v359
    %394 = vmatpush.xpose.msra.mxu0 %v356
    %395 = vmatpush.xpose.msra.mxu0 %v353
    %396 = vmatpush.xpose.msra.mxu0 %v350
    %397 = vmatpush.xpose.msra.mxu0 %v347
    %398 = vmatpush.xpose.msra.mxu0 %v344
    %399 = vmatpush.xpose.msra.mxu0 %v341
    %400 = vmatpush.xpose.msra.mxu0 %v338
    %401 = vmatmul.f32.gmra.mxu0 %v335
    %v402 = vpop.f32.mrf.mxu0
    %v403 = vadd.f32 %v332, %v402
    %404 = vdwg.mxu0
    %v405 = vxor.u32 %v403, 2147483648
    %v406 = vmul.f32 %v405, 1.442695
    %v407 = vpow.pop %v406
    %v408 = vadd.f32 %v407, 1.0
    %v409 = vrcp.pop %v408
    %v410 = vmul.f32 %v408, %v409
    %v411 = vsub.f32 1.0, %v410
    %v412 = vmul.f32 %v409, %v411
    %v413 = vadd.f32 %v409, %v412
    %vm414 = vweird.f32 %v408
    %vm415 = vweird.f32 %v409
    %vm416 = vmor %vm414, %vm415
    %v417 = vsel %vm416, %v409, %v413
    %v418 = vand.u32 2147483647, %v408
    %vm419 = vcmp.eq.f32.partialorder %v418, 8.507059e+37
    %v420 = vand.u32 %v408, 2147483648
    %v421 = vor.u32 1.1754944e-38, %v420
    %v422 = vsel %vm419, %v421, %v417
    %v423 = vmul.f32 1.0, %v422
    %424 = vst [vmem:[#allocation3] sm:$0x1] %v423
    // Predicated region
    $region30: #{tpu_custom_call.1} parent=1 // pred_check
      _
    $region31: #{tpu_custom_call.1} parent=1 // pred_check_branch
      %426 = sbr.rel (0) target = $region33
    $region32: #{tpu_custom_call.1} parent=1 // pred_region
      %428 = vsyncadd [#allocation4], 0
      %s430 = sshll.u32 [#allocation3], 4
      %s431 = int_to_ptr.vmem [resolvable:$true] %s430
      %s432 = sshll.u32 %s7, 4
      %s433 = int_to_ptr.hbm [resolvable:$true] %s432
      %435 = dma.vmem_to_hbm [thread:$0]  %s431, 16, %s433, [#allocation4]
    $region33: #{tpu_custom_call.1} parent=1 // pred_fallthru
      _
    // Predicated region
    $region34: #{tpu_custom_call.1} parent=1 // pred_check
      _
    $region35: #{tpu_custom_call.1} parent=1 // pred_check_branch
      %437 = sbr.rel (0) target = $region37
    $region36: #{tpu_custom_call.1} parent=1 // pred_region
      %439 = dma.done [#allocation4], 16
    $region37: #{tpu_custom_call.1} parent=1 // pred_fallthru
      _
    %440 = vsyncpa [#allocation4], 1

</llo_original>
